<compile_context>
chip_gen: v7x
topology: tpu7x:2x2x1
jax: 0.10.0
libtpu: 0.0.40
codegen_flags: <defaults>
</compile_context>

<pallas_src>
import jax
import jax.numpy as jnp
from jax import lax
from jax.experimental import pallas as pl
from jax.experimental.pallas import tpu as pltpu

LN_EPS = 1e-5  # PyTorch nn.LayerNorm default


def _layernorm(h, gamma, beta):
    """Two-pass (centered) LayerNorm over the last axis, f32 math."""
    inv_n = 1.0 / h.shape[-1]
    mu = jnp.sum(h, axis=-1, keepdims=True) * inv_n
    d = h - mu
    var = jnp.sum(d * d, axis=-1, keepdims=True) * inv_n
    return d * lax.rsqrt(var + LN_EPS) * gamma + beta


def value_net_kernel(
    x_ref,
    w1_ref, b1_ref, g1_ref, bb1_ref,
    w2_ref, b2_ref, g2_ref, bb2_ref,
    w3_ref, b3_ref,
    o_ref,
):
    mm_dtype = w1_ref.dtype  # matmul operand dtype (f32 or bf16); accumulation is f32

    x = x_ref[...].astype(mm_dtype)

    # --- Linear(H -> 2H) + LayerNorm + ReLU ---
    h1 = jnp.dot(x, w1_ref[...], preferred_element_type=jnp.float32) + b1_ref[...]
    h1 = _layernorm(h1, g1_ref[...], bb1_ref[...])
    h1 = jnp.maximum(h1, 0.0)
    # Dropout(p=0.1): identity in eval mode.

    # --- Linear(2H -> H) + LayerNorm + ReLU ---
    h2 = jnp.dot(h1.astype(mm_dtype), w2_ref[...],
                 preferred_element_type=jnp.float32) + b2_ref[...]
    h2 = _layernorm(h2, g2_ref[...], bb2_ref[...])
    h2 = jnp.maximum(h2, 0.0)

    # --- Linear(H -> 1): VPU multiply + XLU lane-reduce (avoid N=1 MXU matmul).
    # Transpose the (TB, 1) column to a lane-dense (1, TB) row before storing.
    out = jnp.sum(h2 * w3_ref[...], axis=-1, keepdims=True) + b3_ref[...]  # (TB, 1)
    o_ref[...] = jnp.transpose(out).astype(o_ref.dtype)                    # (1, TB)


def _round_up(v, m):
    return ((v + m - 1) // m) * m


def _vmem_capacity_bytes():
    try:
        return int(pltpu.get_tpu_info().vmem_capacity_bytes)
    except Exception:
        return 64 * 1024 * 1024  # conservative (v7x per-TC VMEM)


def _vmem_bytes_needed(tb, H, x_itemsize, w_itemsize, weight_bufs=1, io_bufs=2):
    """VMEM footprint model: resident weights (x buffer count), pipelined I/O,
    f32 activations/LN temps and explicit bf16 operand-cast copies."""
    H2 = 2 * H
    weights = weight_bufs * (H * H2 + H2 * H) * w_itemsize            # w1, w2
    small = weight_bufs * (3 * H2 + 4 * H + 2) * 4                    # biases, LN params, w3 row, b3
    io = io_bufs * (tb * H * x_itemsize + tb * 4)                     # x blocks + (1, TB) out blocks
    casts = (tb * H + tb * H2) * w_itemsize if w_itemsize < 4 else 0  # bf16 copies of x, h1
    acts = 2 * (tb * H2 + tb * H) * 4                                 # f32 h1/h2 + LN temporaries
    return weights + small + io + casts + acts


def _choose_batch_tile(B, H, x_itemsize, w_itemsize, budget_bytes):
    """Pick the batch tile TB.

    Small batches run as one full-batch tile (grid == 1).  Larger batches use
    multi-tile TB that is a multiple of 128 (MXU-friendly M, lane-dense output
    blocks), as large as fits the VMEM budget."""
    b8 = _round_up(B, 8)
    if b8 <= 1024 and _vmem_bytes_needed(b8, H, x_itemsize, w_itemsize) <= budget_bytes:
        return b8
    tb = max(128, min(2048, _round_up(b8, 128)))
    while tb > 128 and _vmem_bytes_needed(tb, H, x_itemsize, w_itemsize) > budget_bytes:
        tb -= 128
    return tb


def value_network_forward(x, params, matmul_dtype=jnp.float32):
    """x: (B, H) float32 (or bfloat16), params: dict of weights. Returns (B, 1) f32.

    matmul_dtype: dtype of the MXU operands of the two large matmuls (f32 or
    bf16; bf16 is valid on v5e/v6e/v7x).  Accumulation and LN/ReLU are f32.
    """
    B, H = x.shape
    H2 = 2 * H

    w1 = params["w1"].astype(matmul_dtype)
    w2 = params["w2"].astype(matmul_dtype)

    w_itemsize = jnp.dtype(matmul_dtype).itemsize
    cap = _vmem_capacity_bytes()
    budget = int(0.75 * cap)

    TB = _choose_batch_tile(B, H, x.dtype.itemsize, w_itemsize, budget)
    n_tiles = pl.cdiv(B, TB)
    B_pad = n_tiles * TB
    x_p = x if B_pad == B else jnp.pad(x, ((0, B_pad - B), (0, 0)))

    inputs = (
        x_p,
        w1, params["b1"], params["g1"], params["beta1"],
        w2, params["b2"], params["g2"], params["beta2"],
        params["w3_row"], params["b3"],
    )

    cost = pl.CostEstimate(
        flops=2 * B_pad * H * H2 + 2 * B_pad * H2 * H + 2 * B_pad * H,
        transcendentals=2 * B_pad,  # one rsqrt per row per LayerNorm
        bytes_accessed=sum(int(a.size) * a.dtype.itemsize for a in inputs) + B_pad * 4,
    )

    # Output is a lane-dense (1, B_pad) row slab; multi-tile TB is a multiple of
    # 128 so every (1, TB) output block stores with unmasked vst.
    out_shape = jax.ShapeDtypeStruct((1, B_pad), jnp.float32)
    out_specs = pl.BlockSpec((1, TB), lambda i: (0, i))

    vmem_hi = min(int(0.85 * cap), cap - 8 * 1024 * 1024)

    def build(single_buffer_weights):
        weight_bufs = 1 if single_buffer_weights else 2
        need = _vmem_bytes_needed(TB, H, x.dtype.itemsize, w_itemsize,
                                  weight_bufs=weight_bufs)
        vmem_limit = int(min(vmem_hi, max(32 * 1024 * 1024, int(1.25 * need))))

        const_kw = {}
        if single_buffer_weights:
            # Revisited (0, 0) blocks: a second pipeline buffer is pure VMEM waste.
            const_kw = dict(pipeline_mode=pl.Buffered(1))

        in_specs = [pl.BlockSpec((TB, H), lambda i: (i, 0))]
        in_specs += [pl.BlockSpec(a.shape, lambda i: (0, 0), **const_kw)
                     for a in inputs[1:]]

        return pl.pallas_call(
            value_net_kernel,
            out_shape=out_shape,
            grid_spec=pltpu.PrefetchScalarGridSpec(
                num_scalar_prefetch=0,
                grid=(n_tiles,),
                in_specs=in_specs,
                out_specs=out_specs,
            ),
            compiler_params=pltpu.CompilerParams(
                dimension_semantics=("parallel",),
                vmem_limit_bytes=vmem_limit,
            ),
            cost_estimate=cost,
        )

    try:
        out_row = build(True)(*inputs)
    except Exception:
        # Fallback for JAX versions that reject Buffered(1) on revisited blocks.
        out_row = build(False)(*inputs)

    return out_row[0, :B].reshape(B, 1)


def init_params(key, hidden_size):
    """Deterministic synthetic parameter init (shapes match nn.Linear / nn.LayerNorm)."""
    H, H2 = hidden_size, 2 * hidden_size
    k1, k2, k3, k4, k5, k6 = jax.random.split(key, 6)

    def lin(kw, kb, fan_in, fan_out):
        bound = 1.0 / jnp.sqrt(fan_in)
        w = jax.random.uniform(kw, (fan_in, fan_out), jnp.float32, -bound, bound)
        b = jax.random.uniform(kb, (1, fan_out), jnp.float32, -bound, bound)
        return w, b

    w1, b1 = lin(k1, k2, H, H2)
    w2, b2 = lin(k3, k4, H2, H)
    w3, b3 = lin(k5, k6, H, 1)

    return {
        "w1": w1, "b1": b1,
        "g1": jnp.ones((1, H2), jnp.float32), "beta1": jnp.zeros((1, H2), jnp.float32),
        "w2": w2, "b2": b2,
        "g2": jnp.ones((1, H), jnp.float32), "beta2": jnp.zeros((1, H), jnp.float32),
        "w3_row": w3.T,  # stored as (1, H) row for the VPU multiply-reduce head
        "b3": b3,        # (1, 1)
    }


def reference_forward(x, p):
    """Pure-JAX f32 reference for correctness check."""
    def ln(h, g, b):
        mu = jnp.mean(h, axis=-1, keepdims=True)
        var = jnp.mean(jnp.square(h - mu), axis=-1, keepdims=True)
        return (h - mu) / jnp.sqrt(var + LN_EPS) * g + b

    h = jnp.maximum(ln(x @ p["w1"] + p["b1"], p["g1"], p["beta1"]), 0.0)
    h = jnp.maximum(ln(h @ p["w2"] + p["b2"], p["g2"], p["beta2"]), 0.0)
    return jnp.sum(h * p["w3_row"], axis=-1, keepdims=True) + p["b3"]


if __name__ == "__main__":
    batch = 8
    hidden = 32

    key = jax.random.PRNGKey(0)
    kx, kp = jax.random.split(key)
    x = jax.random.normal(kx, (batch, hidden), jnp.float32)
    params = init_params(kp, hidden)

    ref = reference_forward(x, params)

    # f32 matmul path: tight tolerance vs f32 reference.
    out = jax.block_until_ready(value_network_forward(x, params))
    assert out.shape == (batch, 1), out.shape
    assert jnp.allclose(out, ref, atol=1e-4, rtol=1e-4), (out, ref)

    # bf16 matmul-operand path (valid on v5e/v6e/v7x): loose tolerance.
    out_bf16 = jax.block_until_ready(
        value_network_forward(x, params, matmul_dtype=jnp.bfloat16))
    assert out_bf16.shape == (batch, 1), out_bf16.shape
    assert jnp.allclose(out_bf16, ref, atol=1e-1, rtol=1e-1), (out_bf16, ref)

    print("KERNEL_OK")
</pallas_src>

<mosaic_0001>
module attributes {stable_mosaic.version = 11 : i64} {
  func.func @value_net_kernel(%arg0: i32, %arg1: memref<8x32xf32, #tpu.memory_space<vmem>>, %arg2: memref<32x64xf32, #tpu.memory_space<vmem>>, %arg3: memref<1x64xf32, #tpu.memory_space<vmem>>, %arg4: memref<1x64xf32, #tpu.memory_space<vmem>>, %arg5: memref<1x64xf32, #tpu.memory_space<vmem>>, %arg6: memref<64x32xf32, #tpu.memory_space<vmem>>, %arg7: memref<1x32xf32, #tpu.memory_space<vmem>>, %arg8: memref<1x32xf32, #tpu.memory_space<vmem>>, %arg9: memref<1x32xf32, #tpu.memory_space<vmem>>, %arg10: memref<1x32xf32, #tpu.memory_space<vmem>>, %arg11: memref<1x1xf32, #tpu.memory_space<vmem>>, %arg12: memref<1x8xf32, #tpu.memory_space<vmem>>) attributes {dimension_semantics = [#tpu.dimension_semantics<parallel>], iteration_bounds = array<i64: 1>, scalar_prefetch = 0 : i64, scratch_operands = 0 : i64, tpu.core_type = #tpu.core_type<tc>, window_params = [{transform_indices = @transform_0, window_bounds = array<i64: 8, 32>}, {pipeline_mode = #tpu.pipeline_mode<synchronous>, transform_indices = @transform_1, window_bounds = array<i64: 32, 64>}, {pipeline_mode = #tpu.pipeline_mode<synchronous>, transform_indices = @transform_2, window_bounds = array<i64: 1, 64>}, {pipeline_mode = #tpu.pipeline_mode<synchronous>, transform_indices = @transform_3, window_bounds = array<i64: 1, 64>}, {pipeline_mode = #tpu.pipeline_mode<synchronous>, transform_indices = @transform_4, window_bounds = array<i64: 1, 64>}, {pipeline_mode = #tpu.pipeline_mode<synchronous>, transform_indices = @transform_5, window_bounds = array<i64: 64, 32>}, {pipeline_mode = #tpu.pipeline_mode<synchronous>, transform_indices = @transform_6, window_bounds = array<i64: 1, 32>}, {pipeline_mode = #tpu.pipeline_mode<synchronous>, transform_indices = @transform_7, window_bounds = array<i64: 1, 32>}, {pipeline_mode = #tpu.pipeline_mode<synchronous>, transform_indices = @transform_8, window_bounds = array<i64: 1, 32>}, {pipeline_mode = #tpu.pipeline_mode<synchronous>, transform_indices = @transform_9, window_bounds = array<i64: 1, 32>}, {pipeline_mode = #tpu.pipeline_mode<synchronous>, transform_indices = @transform_10, window_bounds = array<i64: 1, 1>}, {transform_indices = @transform_11, window_bounds = array<i64: 1, 8>}]} {
    %c0 = arith.constant 0 : index
    %c0_0 = arith.constant 0 : index
    %0 = vector.load %arg1[%c0, %c0_0] : memref<8x32xf32, #tpu.memory_space<vmem>>, vector<8x32xf32>
    %c0_1 = arith.constant 0 : index
    %c0_2 = arith.constant 0 : index
    %1 = vector.load %arg2[%c0_1, %c0_2] : memref<32x64xf32, #tpu.memory_space<vmem>>, vector<32x64xf32>
    %cst = arith.constant dense<0.000000e+00> : vector<8x64xf32>
    %2 = tpu.matmul %0, %1, %cst {dimension_numbers = #tpu.dot_dimension_numbers<[1], [0], [0], [1], [0, 0, 1, 1], [], []>} : vector<8x32xf32>, vector<32x64xf32>, vector<8x64xf32> -> vector<8x64xf32>
    %c0_3 = arith.constant 0 : index
    %c0_4 = arith.constant 0 : index
    %3 = vector.load %arg3[%c0_3, %c0_4] : memref<1x64xf32, #tpu.memory_space<vmem>>, vector<1x64xf32>
    %4 = vector.broadcast %3 : vector<1x64xf32> to vector<8x64xf32>
    %5 = arith.addf %2, %4 : vector<8x64xf32>
    %c0_5 = arith.constant 0 : index
    %c0_6 = arith.constant 0 : index
    %6 = vector.load %arg4[%c0_5, %c0_6] : memref<1x64xf32, #tpu.memory_space<vmem>>, vector<1x64xf32>
    %c0_7 = arith.constant 0 : index
    %c0_8 = arith.constant 0 : index
    %7 = vector.load %arg5[%c0_7, %c0_8] : memref<1x64xf32, #tpu.memory_space<vmem>>, vector<1x64xf32>
    %cst_9 = arith.constant dense<0.000000e+00> : vector<8xf32>
    %8 = vector.multi_reduction <add>, %5, %cst_9 [1] : vector<8x64xf32> to vector<8xf32>
    %9 = vector.shape_cast %8 : vector<8xf32> to vector<8x1xf32>
    %cst_10 = arith.constant 1.562500e-02 : f32
    %10 = vector.broadcast %cst_10 : f32 to vector<8x1xf32>
    %11 = arith.mulf %9, %10 : vector<8x1xf32>
    %12 = vector.broadcast %11 : vector<8x1xf32> to vector<8x64xf32>
    %13 = arith.subf %5, %12 : vector<8x64xf32>
    %14 = arith.mulf %13, %13 : vector<8x64xf32>
    %cst_11 = arith.constant dense<0.000000e+00> : vector<8xf32>
    %15 = vector.multi_reduction <add>, %14, %cst_11 [1] : vector<8x64xf32> to vector<8xf32>
    %16 = vector.shape_cast %15 : vector<8xf32> to vector<8x1xf32>
    %cst_12 = arith.constant 1.562500e-02 : f32
    %17 = vector.broadcast %cst_12 : f32 to vector<8x1xf32>
    %18 = arith.mulf %16, %17 : vector<8x1xf32>
    %cst_13 = arith.constant 9.99999974E-6 : f32
    %19 = vector.broadcast %cst_13 : f32 to vector<8x1xf32>
    %20 = arith.addf %18, %19 : vector<8x1xf32>
    %21 = math.rsqrt %20 : vector<8x1xf32>
    %22 = vector.broadcast %21 : vector<8x1xf32> to vector<8x64xf32>
    %23 = arith.mulf %13, %22 : vector<8x64xf32>
    %24 = vector.broadcast %6 : vector<1x64xf32> to vector<8x64xf32>
    %25 = arith.mulf %23, %24 : vector<8x64xf32>
    %26 = vector.broadcast %7 : vector<1x64xf32> to vector<8x64xf32>
    %27 = arith.addf %25, %26 : vector<8x64xf32>
    %cst_14 = arith.constant 0.000000e+00 : f32
    %28 = vector.broadcast %cst_14 : f32 to vector<8x64xf32>
    %29 = arith.maximumf %27, %28 : vector<8x64xf32>
    %c0_15 = arith.constant 0 : index
    %c0_16 = arith.constant 0 : index
    %30 = vector.load %arg6[%c0_15, %c0_16] : memref<64x32xf32, #tpu.memory_space<vmem>>, vector<64x32xf32>
    %cst_17 = arith.constant dense<0.000000e+00> : vector<8x32xf32>
    %31 = tpu.matmul %29, %30, %cst_17 {dimension_numbers = #tpu.dot_dimension_numbers<[1], [0], [0], [1], [0, 0, 1, 1], [], []>} : vector<8x64xf32>, vector<64x32xf32>, vector<8x32xf32> -> vector<8x32xf32>
    %c0_18 = arith.constant 0 : index
    %c0_19 = arith.constant 0 : index
    %32 = vector.load %arg7[%c0_18, %c0_19] : memref<1x32xf32, #tpu.memory_space<vmem>>, vector<1x32xf32>
    %33 = vector.broadcast %32 : vector<1x32xf32> to vector<8x32xf32>
    %34 = arith.addf %31, %33 : vector<8x32xf32>
    %c0_20 = arith.constant 0 : index
    %c0_21 = arith.constant 0 : index
    %35 = vector.load %arg8[%c0_20, %c0_21] : memref<1x32xf32, #tpu.memory_space<vmem>>, vector<1x32xf32>
    %c0_22 = arith.constant 0 : index
    %c0_23 = arith.constant 0 : index
    %36 = vector.load %arg9[%c0_22, %c0_23] : memref<1x32xf32, #tpu.memory_space<vmem>>, vector<1x32xf32>
    %cst_24 = arith.constant dense<0.000000e+00> : vector<8xf32>
    %37 = vector.multi_reduction <add>, %34, %cst_24 [1] : vector<8x32xf32> to vector<8xf32>
    %38 = vector.shape_cast %37 : vector<8xf32> to vector<8x1xf32>
    %cst_25 = arith.constant 3.125000e-02 : f32
    %39 = vector.broadcast %cst_25 : f32 to vector<8x1xf32>
    %40 = arith.mulf %38, %39 : vector<8x1xf32>
    %41 = vector.broadcast %40 : vector<8x1xf32> to vector<8x32xf32>
    %42 = arith.subf %34, %41 : vector<8x32xf32>
    %43 = arith.mulf %42, %42 : vector<8x32xf32>
    %cst_26 = arith.constant dense<0.000000e+00> : vector<8xf32>
    %44 = vector.multi_reduction <add>, %43, %cst_26 [1] : vector<8x32xf32> to vector<8xf32>
    %45 = vector.shape_cast %44 : vector<8xf32> to vector<8x1xf32>
    %cst_27 = arith.constant 3.125000e-02 : f32
    %46 = vector.broadcast %cst_27 : f32 to vector<8x1xf32>
    %47 = arith.mulf %45, %46 : vector<8x1xf32>
    %cst_28 = arith.constant 9.99999974E-6 : f32
    %48 = vector.broadcast %cst_28 : f32 to vector<8x1xf32>
    %49 = arith.addf %47, %48 : vector<8x1xf32>
    %50 = math.rsqrt %49 : vector<8x1xf32>
    %51 = vector.broadcast %50 : vector<8x1xf32> to vector<8x32xf32>
    %52 = arith.mulf %42, %51 : vector<8x32xf32>
    %53 = vector.broadcast %35 : vector<1x32xf32> to vector<8x32xf32>
    %54 = arith.mulf %52, %53 : vector<8x32xf32>
    %55 = vector.broadcast %36 : vector<1x32xf32> to vector<8x32xf32>
    %56 = arith.addf %54, %55 : vector<8x32xf32>
    %cst_29 = arith.constant 0.000000e+00 : f32
    %57 = vector.broadcast %cst_29 : f32 to vector<8x32xf32>
    %58 = arith.maximumf %56, %57 : vector<8x32xf32>
    %c0_30 = arith.constant 0 : index
    %c0_31 = arith.constant 0 : index
    %59 = vector.load %arg10[%c0_30, %c0_31] : memref<1x32xf32, #tpu.memory_space<vmem>>, vector<1x32xf32>
    %60 = vector.broadcast %59 : vector<1x32xf32> to vector<8x32xf32>
    %61 = arith.mulf %58, %60 : vector<8x32xf32>
    %cst_32 = arith.constant dense<0.000000e+00> : vector<8xf32>
    %62 = vector.multi_reduction <add>, %61, %cst_32 [1] : vector<8x32xf32> to vector<8xf32>
    %63 = vector.shape_cast %62 : vector<8xf32> to vector<8x1xf32>
    %c0_33 = arith.constant 0 : index
    %c0_34 = arith.constant 0 : index
    %64 = vector.load %arg11[%c0_33, %c0_34] : memref<1x1xf32, #tpu.memory_space<vmem>>, vector<1x1xf32>
    %65 = vector.broadcast %64 : vector<1x1xf32> to vector<8x1xf32>
    %66 = arith.addf %63, %65 : vector<8x1xf32>
    %67 = tpu.transpose %66, [1, 0] : vector<8x1xf32> -> vector<1x8xf32>
    %c0_35 = arith.constant 0 : index
    %c0_36 = arith.constant 0 : index
    %68 = vector.load %arg12[%c0_35, %c0_36] : memref<1x8xf32, #tpu.memory_space<vmem>>, vector<1x8xf32>
    tpu.vector_store %arg12[%c0_35, %c0_36], %67 {strides = array<i32>} : memref<1x8xf32, #tpu.memory_space<vmem>>, vector<1x8xf32>,
    return
  }
  func.func @transform_0(%arg0: i32) -> (i32, i32) {
    %c0_i32 = arith.constant 0 : i32
    %c0_i32_0 = arith.constant 0 : i32
    return %arg0, %c0_i32 : i32, i32
  }
  func.func @transform_1(%arg0: i32) -> (i32, i32) {
    %c0_i32 = arith.constant 0 : i32
    %c0_i32_0 = arith.constant 0 : i32
    %c0_i32_1 = arith.constant 0 : i32
    return %c0_i32, %c0_i32_0 : i32, i32
  }
  func.func @transform_2(%arg0: i32) -> (i32, i32) {
    %c0_i32 = arith.constant 0 : i32
    %c0_i32_0 = arith.constant 0 : i32
    %c0_i32_1 = arith.constant 0 : i32
    return %c0_i32, %c0_i32_0 : i32, i32
  }
  func.func @transform_3(%arg0: i32) -> (i32, i32) {
    %c0_i32 = arith.constant 0 : i32
    %c0_i32_0 = arith.constant 0 : i32
    %c0_i32_1 = arith.constant 0 : i32
    return %c0_i32, %c0_i32_0 : i32, i32
  }
  func.func @transform_4(%arg0: i32) -> (i32, i32) {
    %c0_i32 = arith.constant 0 : i32
    %c0_i32_0 = arith.constant 0 : i32
    %c0_i32_1 = arith.constant 0 : i32
    return %c0_i32, %c0_i32_0 : i32, i32
  }
  func.func @transform_5(%arg0: i32) -> (i32, i32) {
    %c0_i32 = arith.constant 0 : i32
    %c0_i32_0 = arith.constant 0 : i32
    %c0_i32_1 = arith.constant 0 : i32
    return %c0_i32, %c0_i32_0 : i32, i32
  }
  func.func @transform_6(%arg0: i32) -> (i32, i32) {
    %c0_i32 = arith.constant 0 : i32
    %c0_i32_0 = arith.constant 0 : i32
    %c0_i32_1 = arith.constant 0 : i32
    return %c0_i32, %c0_i32_0 : i32, i32
  }
  func.func @transform_7(%arg0: i32) -> (i32, i32) {
    %c0_i32 = arith.constant 0 : i32
    %c0_i32_0 = arith.constant 0 : i32
    %c0_i32_1 = arith.constant 0 : i32
    return %c0_i32, %c0_i32_0 : i32, i32
  }
  func.func @transform_8(%arg0: i32) -> (i32, i32) {
    %c0_i32 = arith.constant 0 : i32
    %c0_i32_0 = arith.constant 0 : i32
    %c0_i32_1 = arith.constant 0 : i32
    return %c0_i32, %c0_i32_0 : i32, i32
  }
  func.func @transform_9(%arg0: i32) -> (i32, i32) {
    %c0_i32 = arith.constant 0 : i32
    %c0_i32_0 = arith.constant 0 : i32
    %c0_i32_1 = arith.constant 0 : i32
    return %c0_i32, %c0_i32_0 : i32, i32
  }
  func.func @transform_10(%arg0: i32) -> (i32, i32) {
    %c0_i32 = arith.constant 0 : i32
    %c0_i32_0 = arith.constant 0 : i32
    %c0_i32_1 = arith.constant 0 : i32
    return %c0_i32, %c0_i32_0 : i32, i32
  }
  func.func @transform_11(%arg0: i32) -> (i32, i32) {
    %c0_i32 = arith.constant 0 : i32
    %c0_i32_0 = arith.constant 0 : i32
    return %c0_i32, %arg0 : i32, i32
  }
}

module attributes {stable_mosaic.version = 11 : i64} {
  func.func @value_net_kernel(%arg0: i32, %arg1: memref<8x32xf32, #tpu.memory_space<vmem>>, %arg2: memref<32x64xf32, #tpu.memory_space<vmem>>, %arg3: memref<1x64xf32, #tpu.memory_space<vmem>>, %arg4: memref<1x64xf32, #tpu.memory_space<vmem>>, %arg5: memref<1x64xf32, #tpu.memory_space<vmem>>, %arg6: memref<64x32xf32, #tpu.memory_space<vmem>>, %arg7: memref<1x32xf32, #tpu.memory_space<vmem>>, %arg8: memref<1x32xf32, #tpu.memory_space<vmem>>, %arg9: memref<1x32xf32, #tpu.memory_space<vmem>>, %arg10: memref<1x32xf32, #tpu.memory_space<vmem>>, %arg11: memref<1x1xf32, #tpu.memory_space<vmem>>, %arg12: memref<1x8xf32, #tpu.memory_space<vmem>>) attributes {dimension_semantics = [#tpu.dimension_semantics<parallel>], iteration_bounds = array<i64: 1>, scalar_prefetch = 0 : i64, scratch_operands = 0 : i64, tpu.core_type = #tpu.core_type<tc>, window_params = [{transform_indices = @transform_0, window_bounds = array<i64: 8, 32>}, {pipeline_mode = #tpu.pipeline_mode<synchronous>, transform_indices = @transform_1, window_bounds = array<i64: 32, 64>}, {pipeline_mode = #tpu.pipeline_mode<synchronous>, transform_indices = @transform_2, window_bounds = array<i64: 1, 64>}, {pipeline_mode = #tpu.pipeline_mode<synchronous>, transform_indices = @transform_3, window_bounds = array<i64: 1, 64>}, {pipeline_mode = #tpu.pipeline_mode<synchronous>, transform_indices = @transform_4, window_bounds = array<i64: 1, 64>}, {pipeline_mode = #tpu.pipeline_mode<synchronous>, transform_indices = @transform_5, window_bounds = array<i64: 64, 32>}, {pipeline_mode = #tpu.pipeline_mode<synchronous>, transform_indices = @transform_6, window_bounds = array<i64: 1, 32>}, {pipeline_mode = #tpu.pipeline_mode<synchronous>, transform_indices = @transform_7, window_bounds = array<i64: 1, 32>}, {pipeline_mode = #tpu.pipeline_mode<synchronous>, transform_indices = @transform_8, window_bounds = array<i64: 1, 32>}, {pipeline_mode = #tpu.pipeline_mode<synchronous>, transform_indices = @transform_9, window_bounds = array<i64: 1, 32>}, {pipeline_mode = #tpu.pipeline_mode<synchronous>, transform_indices = @transform_10, window_bounds = array<i64: 1, 1>}, {transform_indices = @transform_11, window_bounds = array<i64: 1, 8>}]} {
    %c0 = arith.constant 0 : index
    %c0_0 = arith.constant 0 : index
    %0 = vector.load %arg1[%c0, %c0_0] : memref<8x32xf32, #tpu.memory_space<vmem>>, vector<8x32xf32>
    %c0_1 = arith.constant 0 : index
    %c0_2 = arith.constant 0 : index
    %1 = vector.load %arg2[%c0_1, %c0_2] : memref<32x64xf32, #tpu.memory_space<vmem>>, vector<32x64xf32>
    %cst = arith.constant dense<0.000000e+00> : vector<8x64xf32>
    %2 = tpu.matmul %0, %1, %cst {dimension_numbers = #tpu.dot_dimension_numbers<[1], [0], [0], [1], [0, 0, 1, 1], [], []>} : vector<8x32xf32>, vector<32x64xf32>, vector<8x64xf32> -> vector<8x64xf32>
    %c0_3 = arith.constant 0 : index
    %c0_4 = arith.constant 0 : index
    %3 = vector.load %arg3[%c0_3, %c0_4] : memref<1x64xf32, #tpu.memory_space<vmem>>, vector<1x64xf32>
    %4 = vector.broadcast %3 : vector<1x64xf32> to vector<8x64xf32>
    %5 = arith.addf %2, %4 : vector<8x64xf32>
    %c0_5 = arith.constant 0 : index
    %c0_6 = arith.constant 0 : index
    %6 = vector.load %arg4[%c0_5, %c0_6] : memref<1x64xf32, #tpu.memory_space<vmem>>, vector<1x64xf32>
    %c0_7 = arith.constant 0 : index
    %c0_8 = arith.constant 0 : index
    %7 = vector.load %arg5[%c0_7, %c0_8] : memref<1x64xf32, #tpu.memory_space<vmem>>, vector<1x64xf32>
    %cst_9 = arith.constant dense<0.000000e+00> : vector<8xf32>
    %8 = vector.multi_reduction <add>, %5, %cst_9 [1] : vector<8x64xf32> to vector<8xf32>
    %9 = vector.shape_cast %8 : vector<8xf32> to vector<8x1xf32>
    %cst_10 = arith.constant 1.562500e-02 : f32
    %10 = vector.broadcast %cst_10 : f32 to vector<8x1xf32>
    %11 = arith.mulf %9, %10 : vector<8x1xf32>
    %12 = vector.broadcast %11 : vector<8x1xf32> to vector<8x64xf32>
    %13 = arith.subf %5, %12 : vector<8x64xf32>
    %14 = arith.mulf %13, %13 : vector<8x64xf32>
    %cst_11 = arith.constant dense<0.000000e+00> : vector<8xf32>
    %15 = vector.multi_reduction <add>, %14, %cst_11 [1] : vector<8x64xf32> to vector<8xf32>
    %16 = vector.shape_cast %15 : vector<8xf32> to vector<8x1xf32>
    %cst_12 = arith.constant 1.562500e-02 : f32
    %17 = vector.broadcast %cst_12 : f32 to vector<8x1xf32>
    %18 = arith.mulf %16, %17 : vector<8x1xf32>
    %cst_13 = arith.constant 9.99999974E-6 : f32
    %19 = vector.broadcast %cst_13 : f32 to vector<8x1xf32>
    %20 = arith.addf %18, %19 : vector<8x1xf32>
    %21 = math.rsqrt %20 : vector<8x1xf32>
    %22 = vector.broadcast %21 : vector<8x1xf32> to vector<8x64xf32>
    %23 = arith.mulf %13, %22 : vector<8x64xf32>
    %24 = vector.broadcast %6 : vector<1x64xf32> to vector<8x64xf32>
    %25 = arith.mulf %23, %24 : vector<8x64xf32>
    %26 = vector.broadcast %7 : vector<1x64xf32> to vector<8x64xf32>
    %27 = arith.addf %25, %26 : vector<8x64xf32>
    %cst_14 = arith.constant 0.000000e+00 : f32
    %28 = vector.broadcast %cst_14 : f32 to vector<8x64xf32>
    %29 = arith.maximumf %27, %28 : vector<8x64xf32>
    %c0_15 = arith.constant 0 : index
    %c0_16 = arith.constant 0 : index
    %30 = vector.load %arg6[%c0_15, %c0_16] : memref<64x32xf32, #tpu.memory_space<vmem>>, vector<64x32xf32>
    %cst_17 = arith.constant dense<0.000000e+00> : vector<8x32xf32>
    %31 = tpu.matmul %29, %30, %cst_17 {dimension_numbers = #tpu.dot_dimension_numbers<[1], [0], [0], [1], [0, 0, 1, 1], [], []>} : vector<8x64xf32>, vector<64x32xf32>, vector<8x32xf32> -> vector<8x32xf32>
    %c0_18 = arith.constant 0 : index
    %c0_19 = arith.constant 0 : index
    %32 = vector.load %arg7[%c0_18, %c0_19] : memref<1x32xf32, #tpu.memory_space<vmem>>, vector<1x32xf32>
    %33 = vector.broadcast %32 : vector<1x32xf32> to vector<8x32xf32>
    %34 = arith.addf %31, %33 : vector<8x32xf32>
    %c0_20 = arith.constant 0 : index
    %c0_21 = arith.constant 0 : index
    %35 = vector.load %arg8[%c0_20, %c0_21] : memref<1x32xf32, #tpu.memory_space<vmem>>, vector<1x32xf32>
    %c0_22 = arith.constant 0 : index
    %c0_23 = arith.constant 0 : index
    %36 = vector.load %arg9[%c0_22, %c0_23] : memref<1x32xf32, #tpu.memory_space<vmem>>, vector<1x32xf32>
    %cst_24 = arith.constant dense<0.000000e+00> : vector<8xf32>
    %37 = vector.multi_reduction <add>, %34, %cst_24 [1] : vector<8x32xf32> to vector<8xf32>
    %38 = vector.shape_cast %37 : vector<8xf32> to vector<8x1xf32>
    %cst_25 = arith.constant 3.125000e-02 : f32
    %39 = vector.broadcast %cst_25 : f32 to vector<8x1xf32>
    %40 = arith.mulf %38, %39 : vector<8x1xf32>
    %41 = vector.broadcast %40 : vector<8x1xf32> to vector<8x32xf32>
    %42 = arith.subf %34, %41 : vector<8x32xf32>
    %43 = arith.mulf %42, %42 : vector<8x32xf32>
    %cst_26 = arith.constant dense<0.000000e+00> : vector<8xf32>
    %44 = vector.multi_reduction <add>, %43, %cst_26 [1] : vector<8x32xf32> to vector<8xf32>
    %45 = vector.shape_cast %44 : vector<8xf32> to vector<8x1xf32>
    %cst_27 = arith.constant 3.125000e-02 : f32
    %46 = vector.broadcast %cst_27 : f32 to vector<8x1xf32>
    %47 = arith.mulf %45, %46 : vector<8x1xf32>
    %cst_28 = arith.constant 9.99999974E-6 : f32
    %48 = vector.broadcast %cst_28 : f32 to vector<8x1xf32>
    %49 = arith.addf %47, %48 : vector<8x1xf32>
    %50 = math.rsqrt %49 : vector<8x1xf32>
    %51 = vector.broadcast %50 : vector<8x1xf32> to vector<8x32xf32>
    %52 = arith.mulf %42, %51 : vector<8x32xf32>
    %53 = vector.broadcast %35 : vector<1x32xf32> to vector<8x32xf32>
    %54 = arith.mulf %52, %53 : vector<8x32xf32>
    %55 = vector.broadcast %36 : vector<1x32xf32> to vector<8x32xf32>
    %56 = arith.addf %54, %55 : vector<8x32xf32>
    %cst_29 = arith.constant 0.000000e+00 : f32
    %57 = vector.broadcast %cst_29 : f32 to vector<8x32xf32>
    %58 = arith.maximumf %56, %57 : vector<8x32xf32>
    %c0_30 = arith.constant 0 : index
    %c0_31 = arith.constant 0 : index
    %59 = vector.load %arg10[%c0_30, %c0_31] : memref<1x32xf32, #tpu.memory_space<vmem>>, vector<1x32xf32>
    %60 = vector.broadcast %59 : vector<1x32xf32> to vector<8x32xf32>
    %61 = arith.mulf %58, %60 : vector<8x32xf32>
    %cst_32 = arith.constant dense<0.000000e+00> : vector<8xf32>
    %62 = vector.multi_reduction <add>, %61, %cst_32 [1] : vector<8x32xf32> to vector<8xf32>
    %63 = vector.shape_cast %62 : vector<8xf32> to vector<8x1xf32>
    %c0_33 = arith.constant 0 : index
    %c0_34 = arith.constant 0 : index
    %64 = vector.load %arg11[%c0_33, %c0_34] : memref<1x1xf32, #tpu.memory_space<vmem>>, vector<1x1xf32>
    %65 = vector.broadcast %64 : vector<1x1xf32> to vector<8x1xf32>
    %66 = arith.addf %63, %65 : vector<8x1xf32>
    %67 = tpu.transpose %66, [1, 0] : vector<8x1xf32> -> vector<1x8xf32>
    %c0_35 = arith.constant 0 : index
    %c0_36 = arith.constant 0 : index
    %68 = vector.load %arg12[%c0_35, %c0_36] : memref<1x8xf32, #tpu.memory_space<vmem>>, vector<1x8xf32>
    tpu.vector_store %arg12[%c0_35, %c0_36], %67 {strides = array<i32>} : memref<1x8xf32, #tpu.memory_space<vmem>>, vector<1x8xf32>,
    return
  }
  func.func @transform_0(%arg0: i32) -> (i32, i32) {
    %c0_i32 = arith.constant 0 : i32
    %c0_i32_0 = arith.constant 0 : i32
    return %arg0, %c0_i32 : i32, i32
  }
  func.func @transform_1(%arg0: i32) -> (i32, i32) {
    %c0_i32 = arith.constant 0 : i32
    %c0_i32_0 = arith.constant 0 : i32
    %c0_i32_1 = arith.constant 0 : i32
    return %c0_i32, %c0_i32_0 : i32, i32
  }
  func.func @transform_2(%arg0: i32) -> (i32, i32) {
    %c0_i32 = arith.constant 0 : i32
    %c0_i32_0 = arith.constant 0 : i32
    %c0_i32_1 = arith.constant 0 : i32
    return %c0_i32, %c0_i32_0 : i32, i32
  }
  func.func @transform_3(%arg0: i32) -> (i32, i32) {
    %c0_i32 = arith.constant 0 : i32
    %c0_i32_0 = arith.constant 0 : i32
    %c0_i32_1 = arith.constant 0 : i32
    return %c0_i32, %c0_i32_0 : i32, i32
  }
  func.func @transform_4(%arg0: i32) -> (i32, i32) {
    %c0_i32 = arith.constant 0 : i32
    %c0_i32_0 = arith.constant 0 : i32
    %c0_i32_1 = arith.constant 0 : i32
    return %c0_i32, %c0_i32_0 : i32, i32
  }
  func.func @transform_5(%arg0: i32) -> (i32, i32) {
    %c0_i32 = arith.constant 0 : i32
    %c0_i32_0 = arith.constant 0 : i32
    %c0_i32_1 = arith.constant 0 : i32
    return %c0_i32, %c0_i32_0 : i32, i32
  }
  func.func @transform_6(%arg0: i32) -> (i32, i32) {
    %c0_i32 = arith.constant 0 : i32
    %c0_i32_0 = arith.constant 0 : i32
    %c0_i32_1 = arith.constant 0 : i32
    return %c0_i32, %c0_i32_0 : i32, i32
  }
  func.func @transform_7(%arg0: i32) -> (i32, i32) {
    %c0_i32 = arith.constant 0 : i32
    %c0_i32_0 = arith.constant 0 : i32
    %c0_i32_1 = arith.constant 0 : i32
    return %c0_i32, %c0_i32_0 : i32, i32
  }
  func.func @transform_8(%arg0: i32) -> (i32, i32) {
    %c0_i32 = arith.constant 0 : i32
    %c0_i32_0 = arith.constant 0 : i32
    %c0_i32_1 = arith.constant 0 : i32
    return %c0_i32, %c0_i32_0 : i32, i32
  }
  func.func @transform_9(%arg0: i32) -> (i32, i32) {
    %c0_i32 = arith.constant 0 : i32
    %c0_i32_0 = arith.constant 0 : i32
    %c0_i32_1 = arith.constant 0 : i32
    return %c0_i32, %c0_i32_0 : i32, i32
  }
  func.func @transform_10(%arg0: i32) -> (i32, i32) {
    %c0_i32 = arith.constant 0 : i32
    %c0_i32_0 = arith.constant 0 : i32
    %c0_i32_1 = arith.constant 0 : i32
    return %c0_i32, %c0_i32_0 : i32, i32
  }
  func.func @transform_11(%arg0: i32) -> (i32, i32) {
    %c0_i32 = arith.constant 0 : i32
    %c0_i32_0 = arith.constant 0 : i32
    return %c0_i32, %arg0 : i32, i32
  }
}

</mosaic_0001>

<llo_original>
// kernel: tpu_custom_call.1
$region0: #{tpu_custom_call.1}
  #allocation0 [shape = 'u32[]', space=smem, size = 0x4, offset = 0x4, fixed_abs, tag = 'smem constant byte address 0x4 - core index']
  #allocation1 [shape = 'u32[144,128]{1,0:T(1,128)}', space=vmem, size = 0x12000, scoped, tag = 'internal scratch']
  #allocation2 [shape = 'f32[1,1]{1,0:T(1,128)S(1)}', space=vmem, size = 0x200, scoped, tag = 'scoped memory for tpu_custom_call.1']
  %s0 = inlined_call_operand.vmem [shape: f32[8,32], index: 0, kind: input, shape index: {}]
  %s1 = inlined_call_operand.vmem [shape: f32[32,64], index: 1, kind: input, shape index: {}]
  %s2 = inlined_call_operand.vmem [shape: f32[1,64], index: 2, kind: input, shape index: {}]
  %s3 = inlined_call_operand.vmem [shape: f32[1,64], index: 3, kind: input, shape index: {}]
  %s4 = inlined_call_operand.vmem [shape: f32[1,64], index: 4, kind: input, shape index: {}]
  %s5 = inlined_call_operand.vmem [shape: f32[64,32], index: 5, kind: input, shape index: {}]
  %s6 = inlined_call_operand.vmem [shape: f32[1,32], index: 6, kind: input, shape index: {}]
  %s7 = inlined_call_operand.vmem [shape: f32[1,32], index: 7, kind: input, shape index: {}]
  %s8 = inlined_call_operand.vmem [shape: f32[1,32], index: 8, kind: input, shape index: {}]
  %s9 = inlined_call_operand.vmem [shape: f32[1,32], index: 9, kind: input, shape index: {}]
  %s10 = inlined_call_operand.<no memory space> [shape: f32[1,1], index: 10, kind: input, shape index: {}]
  %s11 = inlined_call_operand.hbm [shape: f32[1,8], index: 11, kind: output, shape index: {}]
  %s12 = sld [smem:[#allocation0]]
  $region54: #{tpu_custom_call.1} parent=0
    _
  %s14 = ssub.s32 1, %s12
  %s15 = scalar_select 0, %s14, %s12
  %v16 = vstv %s10
  %17 = vst [vmem:[#allocation2] sm:$0x1] %v16
  $region1: #{tpu_custom_call.1} parent=0
    #allocation3 [shape = 'u8[512]{0}', space=vmem, size = 0x400, scoped, tag = 'output window, operand 0, single buffered']
    #allocation4 [shape = 's32[1]{0}', space=sflag, size = 0x4, scoped, tag = 'scoped memory for tpu_custom_call.1']
    %18 = vsyncpa [#allocation4], 0
    // Predicated region
    $region2: #{tpu_custom_call.1} parent=1 // pred_check
      _
    $region3: #{tpu_custom_call.1} parent=1 // pred_check_branch
      %20 = sbr.rel (0) target = $region5
    $region4: #{tpu_custom_call.1} parent=1 // pred_region
      _
    $region5: #{tpu_custom_call.1} parent=1 // pred_fallthru
      _
    // Predicated region
    $region6: #{tpu_custom_call.1} parent=1 // pred_check
      _
    $region7: #{tpu_custom_call.1} parent=1 // pred_check_branch
      %22 = sbr.rel (0) target = $region9
    $region8: #{tpu_custom_call.1} parent=1 // pred_region
      _
    $region9: #{tpu_custom_call.1} parent=1 // pred_fallthru
      _
    // Predicated region
    $region10: #{tpu_custom_call.1} parent=1 // pred_check
      _
    $region11: #{tpu_custom_call.1} parent=1 // pred_check_branch
      %24 = sbr.rel (0) target = $region13
    $region12: #{tpu_custom_call.1} parent=1 // pred_region
      _
    $region13: #{tpu_custom_call.1} parent=1 // pred_fallthru
      _
    // Predicated region
    $region14: #{tpu_custom_call.1} parent=1 // pred_check
      _
    $region15: #{tpu_custom_call.1} parent=1 // pred_check_branch
      %26 = sbr.rel (0) target = $region17
    $region16: #{tpu_custom_call.1} parent=1 // pred_region
      _
    $region17: #{tpu_custom_call.1} parent=1 // pred_fallthru
      _
    // Predicated region
    $region18: #{tpu_custom_call.1} parent=1 // pred_check
      _
    $region19: #{tpu_custom_call.1} parent=1 // pred_check_branch
      %28 = sbr.rel (0) target = $region21
    $region20: #{tpu_custom_call.1} parent=1 // pred_region
      _
    $region21: #{tpu_custom_call.1} parent=1 // pred_fallthru
      _
    // Predicated region
    $region22: #{tpu_custom_call.1} parent=1 // pred_check
      _
    $region23: #{tpu_custom_call.1} parent=1 // pred_check_branch
      %30 = sbr.rel (0) target = $region25
    $region24: #{tpu_custom_call.1} parent=1 // pred_region
      _
    $region25: #{tpu_custom_call.1} parent=1 // pred_fallthru
      _
    // Predicated region
    $region26: #{tpu_custom_call.1} parent=1 // pred_check
      _
    $region27: #{tpu_custom_call.1} parent=1 // pred_check_branch
      %32 = sbr.rel (0) target = $region29
    $region28: #{tpu_custom_call.1} parent=1 // pred_region
      _
    $region29: #{tpu_custom_call.1} parent=1 // pred_fallthru
      _
    // Predicated region
    $region30: #{tpu_custom_call.1} parent=1 // pred_check
      _
    $region31: #{tpu_custom_call.1} parent=1 // pred_check_branch
      %34 = sbr.rel (0) target = $region33
    $region32: #{tpu_custom_call.1} parent=1 // pred_region
      _
    $region33: #{tpu_custom_call.1} parent=1 // pred_fallthru
      _
    // Predicated region
    $region34: #{tpu_custom_call.1} parent=1 // pred_check
      _
    $region35: #{tpu_custom_call.1} parent=1 // pred_check_branch
      %36 = sbr.rel (0) target = $region37
    $region36: #{tpu_custom_call.1} parent=1 // pred_region
      _
    $region37: #{tpu_custom_call.1} parent=1 // pred_fallthru
      _
    // Predicated region
    $region38: #{tpu_custom_call.1} parent=1 // pred_check
      _
    $region39: #{tpu_custom_call.1} parent=1 // pred_check_branch
      %38 = sbr.rel (0) target = $region41
    $region40: #{tpu_custom_call.1} parent=1 // pred_region
      _
    $region41: #{tpu_custom_call.1} parent=1 // pred_fallthru
      _
    // Predicated region
    $region42: #{tpu_custom_call.1} parent=1 // pred_check
      _
    $region43: #{tpu_custom_call.1} parent=1 // pred_check_branch
      %40 = sbr.rel (0) target = $region45
    $region44: #{tpu_custom_call.1} parent=1 // pred_region
      _
    $region45: #{tpu_custom_call.1} parent=1 // pred_fallthru
      _
    %v41 = vld [vmem:[%s0] sm:$0xff]
    %v42 = vld [vmem:[%s1] sm:$0xff]
    %v43 = vld [vmem:[%s1 + $0x8] sm:$0xff]
    %v44 = vld [vmem:[%s1 + $0x10] sm:$0xff]
    %v45 = vld [vmem:[%s1 + $0x18] sm:$0xff]
    %v46 = vld [vmem:[%s2] sm:$0x1]
    %v48 = vlaneseq
    %v49 = vshrl.u32 %v48, 7
    %v50 = vsub.s32 0, %v49
    %v51 = vrot.slane %v46, %v50
    %vm53 = vcmask 261120
    %v55 = vsel %vm53, %v41, 0
    %57 = vmatprep.subr.mxu0 0.0
    %58 = vmatpush1.msra.mxu0 %v42
    %59 = vmatprep.subr.mxu0 0.0
    %60 = vmatpush1.msra.mxu0 %v43
    %61 = vmatprep.subr.mxu0 0.0
    %62 = vmatpush1.msra.mxu0 %v44
    %63 = vmatprep.subr.mxu0 0.0
    %64 = vmatpush1.msra.mxu0 %v45
    %65 = vmatprep.subr.mxu0 0.0
    %66 = vmatpush1.msra.mxu0 0.0
    %67 = vmatprep.subr.mxu0 0.0
    %68 = vmatpush1.msra.mxu0 0.0
    %69 = vmatprep.subr.mxu0 0.0
    %70 = vmatpush1.msra.mxu0 0.0
    %71 = vmatprep.subr.mxu0 0.0
    %72 = vmatpush1.msra.mxu0 0.0
    %73 = vmatprep.subr.mxu0 0.0
    %74 = vmatpush1.msra.mxu0 0.0
    %75 = vmatprep.subr.mxu0 0.0
    %76 = vmatpush1.msra.mxu0 0.0
    %77 = vmatprep.subr.mxu0 0.0
    %78 = vmatpush1.msra.mxu0 0.0
    %79 = vmatprep.subr.mxu0 0.0
    %80 = vmatpush1.msra.mxu0 0.0
    %81 = vmatprep.subr.mxu0 0.0
    %82 = vmatpush1.msra.mxu0 0.0
    %83 = vmatprep.subr.mxu0 0.0
    %84 = vmatpush1.msra.mxu0 0.0
    %85 = vmatprep.subr.mxu0 0.0
    %86 = vmatpush1.msra.mxu0 0.0
    %87 = vmatprep.subr.mxu0 0.0
    %88 = vmatpush1.msra.mxu0 0.0
    %89 = vmatprep.subr.mxu0 0.0
    %90 = vmatpush1.msra.mxu0 0.0
    %91 = vmatprep.subr.mxu0 0.0
    %92 = vmatpush1.msra.mxu0 0.0
    %93 = vmatprep.subr.mxu0 0.0
    %94 = vmatpush1.msra.mxu0 0.0
    %95 = vmatprep.subr.mxu0 0.0
    %96 = vmatpush1.msra.mxu0 0.0
    %97 = vmatprep.subr.mxu0 0.0
    %98 = vmatpush1.msra.mxu0 0.0
    %99 = vmatprep.subr.mxu0 0.0
    %100 = vmatpush1.msra.mxu0 0.0
    %101 = vmatprep.subr.mxu0 0.0
    %102 = vmatpush1.msra.mxu0 0.0
    %103 = vmatprep.subr.mxu0 0.0
    %104 = vmatpush1.msra.mxu0 0.0
    %105 = vmatprep.subr.mxu0 0.0
    %106 = vmatpush1.msra.mxu0 0.0
    %107 = vmatprep.subr.mxu0 0.0
    %108 = vmatpush1.msra.mxu0 0.0
    %109 = vmatprep.subr.mxu0 0.0
    %110 = vmatpush1.msra.mxu0 0.0
    %111 = vmatprep.subr.mxu0 0.0
    %112 = vmatpush1.msra.mxu0 0.0
    %113 = vmatprep.subr.mxu0 0.0
    %114 = vmatpush1.msra.mxu0 0.0
    %115 = vmatprep.subr.mxu0 0.0
    %116 = vmatpush1.msra.mxu0 0.0
    %117 = vmatprep.subr.mxu0 0.0
    %118 = vmatpush1.msra.mxu0 0.0
    %119 = vmatprep.subr.mxu0 0.0
    %120 = vmatpush1.msra.mxu0 0.0
    %121 = vmatprep.mubr.f32.mxu0 0.0
    %122 = vmatmul.mubr.f32.gmra.mrb[0].mxu0 %v55
    %v123 = vpop.f32.mrb[0].mxu0
    %v124 = vadd.f32 %v51, %v123
    %v125 = vpop.f32.mrb[0].mxu0
    %126 = vdwg.mxu0
    %v127 = vld [vmem:[%s3] sm:$0x1]
    %v128 = vld [vmem:[%s4] sm:$0x1]
    %vm129 = vcmask 523264
    %v130 = vsel %vm129, %v124, 0.0
    %131 = vadd.xlane.f32.xlu0 %v130
    %v132 = vpop.xlane.xlu0 %131
    %v133 = vmul.f32 %v132, 0.015625
    %v134 = vsub.f32 %v124, %v133
    %v135 = vmul.f32 %v134, %v134
    %v136 = vsel %vm129, %v135, 0.0
    %137 = vadd.xlane.f32.xlu0 %v136
    %v138 = vpop.xlane.xlu0 %137
    %v139 = vmul.f32 %v138, 0.015625
    %v140 = vadd.f32 %v139, 1e-05
    %v141 = vrsqrt.pop %v140
    %v142 = vmul.f32 %v134, %v141
    %v144 = vlaneseq
    %v145 = vshrl.u32 %v144, 7
    %v146 = vsub.s32 0, %v145
    %v147 = vrot.slane %v127, %v146
    %v149 = vmul.f32 %v142, %v147
    %v151 = vlaneseq
    %v152 = vshrl.u32 %v151, 7
    %v153 = vsub.s32 0, %v152
    %v154 = vrot.slane %v128, %v153
    %v156 = vadd.f32 %v149, %v154
    %v157 = vmax.f32 %v156, 0.0
    %v158 = vld [vmem:[%s5] sm:$0xff]
    %v159 = vld [vmem:[%s5 + $0x8] sm:$0xff]
    %v160 = vld [vmem:[%s5 + $0x10] sm:$0xff]
    %v161 = vld [vmem:[%s5 + $0x18] sm:$0xff]
    %v162 = vld [vmem:[%s5 + $0x20] sm:$0xff]
    %v163 = vld [vmem:[%s5 + $0x28] sm:$0xff]
    %v164 = vld [vmem:[%s5 + $0x30] sm:$0xff]
    %v165 = vld [vmem:[%s5 + $0x38] sm:$0xff]
    %v166 = vld [vmem:[%s6] sm:$0x1]
    %v168 = vlaneseq
    %v169 = vshrl.u32 %v168, 7
    %v170 = vsub.s32 0, %v169
    %v171 = vrot.slane %v166, %v170
    %v174 = vsel %vm129, %v157, 0
    %176 = vmatprep.subr.mxu0 0.0
    %177 = vmatpush1.msra.mxu0 %v158
    %178 = vmatprep.subr.mxu0 0.0
    %179 = vmatpush1.msra.mxu0 %v159
    %180 = vmatprep.subr.mxu0 0.0
    %181 = vmatpush1.msra.mxu0 %v160
    %182 = vmatprep.subr.mxu0 0.0
    %183 = vmatpush1.msra.mxu0 %v161
    %184 = vmatprep.subr.mxu0 0.0
    %185 = vmatpush1.msra.mxu0 %v162
    %186 = vmatprep.subr.mxu0 0.0
    %187 = vmatpush1.msra.mxu0 %v163
    %188 = vmatprep.subr.mxu0 0.0
    %189 = vmatpush1.msra.mxu0 %v164
    %190 = vmatprep.subr.mxu0 0.0
    %191 = vmatpush1.msra.mxu0 %v165
    %192 = vmatprep.subr.mxu0 0.0
    %193 = vmatpush1.msra.mxu0 0.0
    %194 = vmatprep.subr.mxu0 0.0
    %195 = vmatpush1.msra.mxu0 0.0
    %196 = vmatprep.subr.mxu0 0.0
    %197 = vmatpush1.msra.mxu0 0.0
    %198 = vmatprep.subr.mxu0 0.0
    %199 = vmatpush1.msra.mxu0 0.0
    %200 = vmatprep.subr.mxu0 0.0
    %201 = vmatpush1.msra.mxu0 0.0
    %202 = vmatprep.subr.mxu0 0.0
    %203 = vmatpush1.msra.mxu0 0.0
    %204 = vmatprep.subr.mxu0 0.0
    %205 = vmatpush1.msra.mxu0 0.0
    %206 = vmatprep.subr.mxu0 0.0
    %207 = vmatpush1.msra.mxu0 0.0
    %208 = vmatprep.subr.mxu0 0.0
    %209 = vmatpush1.msra.mxu0 0.0
    %210 = vmatprep.subr.mxu0 0.0
    %211 = vmatpush1.msra.mxu0 0.0
    %212 = vmatprep.subr.mxu0 0.0
    %213 = vmatpush1.msra.mxu0 0.0
    %214 = vmatprep.subr.mxu0 0.0
    %215 = vmatpush1.msra.mxu0 0.0
    %216 = vmatprep.subr.mxu0 0.0
    %217 = vmatpush1.msra.mxu0 0.0
    %218 = vmatprep.subr.mxu0 0.0
    %219 = vmatpush1.msra.mxu0 0.0
    %220 = vmatprep.subr.mxu0 0.0
    %221 = vmatpush1.msra.mxu0 0.0
    %222 = vmatprep.subr.mxu0 0.0
    %223 = vmatpush1.msra.mxu0 0.0
    %224 = vmatprep.subr.mxu0 0.0
    %225 = vmatpush1.msra.mxu0 0.0
    %226 = vmatprep.subr.mxu0 0.0
    %227 = vmatpush1.msra.mxu0 0.0
    %228 = vmatprep.subr.mxu0 0.0
    %229 = vmatpush1.msra.mxu0 0.0
    %230 = vmatprep.subr.mxu0 0.0
    %231 = vmatpush1.msra.mxu0 0.0
    %232 = vmatprep.subr.mxu0 0.0
    %233 = vmatpush1.msra.mxu0 0.0
    %234 = vmatprep.subr.mxu0 0.0
    %235 = vmatpush1.msra.mxu0 0.0
    %236 = vmatprep.subr.mxu0 0.0
    %237 = vmatpush1.msra.mxu0 0.0
    %238 = vmatprep.subr.mxu0 0.0
    %239 = vmatpush1.msra.mxu0 0.0
    %240 = vmatprep.mubr.f32.mxu0 0.0
    %241 = vmatmul.mubr.f32.gmra.mrb[0].mxu0 %v174
    %v242 = vpop.f32.mrb[0].mxu0
    %v243 = vadd.f32 %v171, %v242
    %v244 = vpop.f32.mrb[0].mxu0
    %245 = vdwg.mxu0
    %v246 = vld [vmem:[%s7] sm:$0x1]
    %v247 = vld [vmem:[%s8] sm:$0x1]
    %v248 = vsel %vm53, %v243, 0.0
    %249 = vadd.xlane.f32.xlu0 %v248
    %v250 = vpop.xlane.xlu0 %249
    %v251 = vmul.f32 %v250, 0.03125
    %v252 = vsub.f32 %v243, %v251
    %v253 = vmul.f32 %v252, %v252
    %v254 = vsel %vm53, %v253, 0.0
    %255 = vadd.xlane.f32.xlu0 %v254
    %v256 = vpop.xlane.xlu0 %255
    %v257 = vmul.f32 %v256, 0.03125
    %v258 = vadd.f32 %v257, 1e-05
    %v259 = vrsqrt.pop %v258
    %v260 = vmul.f32 %v252, %v259
    %v262 = vlaneseq
    %v263 = vshrl.u32 %v262, 7
    %v264 = vsub.s32 0, %v263
    %v265 = vrot.slane %v246, %v264
    %v267 = vmul.f32 %v260, %v265
    %v269 = vlaneseq
    %v270 = vshrl.u32 %v269, 7
    %v271 = vsub.s32 0, %v270
    %v272 = vrot.slane %v247, %v271
    %v274 = vadd.f32 %v267, %v272
    %v275 = vmax.f32 %v274, 0.0
    %v276 = vld [vmem:[%s9] sm:$0x1]
    %v278 = vlaneseq
    %v279 = vshrl.u32 %v278, 7
    %v280 = vsub.s32 0, %v279
    %v281 = vrot.slane %v276, %v280
    %v283 = vmul.f32 %v275, %v281
    %v284 = vsel %vm53, %v283, 0.0
    %285 = vadd.xlane.f32.xlu0 %v284
    %v286 = vpop.xlane.xlu0 %285
    %v287 = vld [vmem:[#allocation2] sm:$0x1]
    %v289 = vlaneseq
    %v290 = vshrl.u32 %v289, 7
    %v291 = vsub.s32 0, %v290
    %v292 = vrot.slane %v287, %v291
    %v294 = vadd.f32 %v286, %v292
    %295 = vxpose.xlu0.b32.start [1/16] %v294, 128
    %296 = vxpose.xlu0.b32.cont [2/16] 0.0, 128
    %297 = vxpose.xlu0.b32.cont [3/16] 0.0, 128
    %298 = vxpose.xlu0.b32.cont [4/16] 0.0, 128
    %299 = vxpose.xlu0.b32.cont [5/16] 0.0, 128
    %300 = vxpose.xlu0.b32.cont [6/16] 0.0, 128
    %301 = vxpose.xlu0.b32.cont [7/16] 0.0, 128
    %302 = vxpose.xlu0.b32.cont [8/16] 0.0, 128
    %303 = vxpose.xlu0.b32.cont [9/16] 0.0, 128
    %304 = vxpose.xlu0.b32.cont [10/16] 0.0, 128
    %305 = vxpose.xlu0.b32.cont [11/16] 0.0, 128
    %306 = vxpose.xlu0.b32.cont [12/16] 0.0, 128
    %307 = vxpose.xlu0.b32.cont [13/16] 0.0, 128
    %308 = vxpose.xlu0.b32.cont [14/16] 0.0, 128
    %309 = vxpose.xlu0.b32.cont [15/16] 0.0, 128
    %310 = vxpose.xlu0.b32.end [16/16] 0.0, 128
    %v311 = vpop.trf.xlu0
    %v312 = vpop.trf.xlu0
    %v313 = vpop.trf.xlu0
    %v314 = vpop.trf.xlu0
    %v315 = vpop.trf.xlu0
    %v316 = vpop.trf.xlu0
    %v317 = vpop.trf.xlu0
    %v318 = vpop.trf.xlu0
    %v319 = vpop.trf.xlu0
    %v320 = vpop.trf.xlu0
    %v321 = vpop.trf.xlu0
    %v322 = vpop.trf.xlu0
    %v323 = vpop.trf.xlu0
    %v324 = vpop.trf.xlu0
    %v325 = vpop.trf.xlu0
    %v326 = vpop.trf.xlu0
    %vm327 = vcmask 57344
    %328 = vst.msk [vmem:[#allocation3] sm:$0x1] %vm327, %v311
    // Predicated region
    $region46: #{tpu_custom_call.1} parent=1 // pred_check
      _
    $region47: #{tpu_custom_call.1} parent=1 // pred_check_branch
      %330 = sbr.rel (0) target = $region49
    $region48: #{tpu_custom_call.1} parent=1 // pred_region
      %s332 = ssub.s32 16, 16
      %333 = vsyncadd [#allocation4], %s332
      %s335 = sshll.u32 [#allocation3], 4
      %s336 = int_to_ptr.vmem [resolvable:$true] %s335
      %338 = dma.vmem_to_hbm [thread:$0]  %s336, 16, %s11, [#allocation4]
    $region49: #{tpu_custom_call.1} parent=1 // pred_fallthru
      _
    // Predicated region
    $region50: #{tpu_custom_call.1} parent=1 // pred_check
      _
    $region51: #{tpu_custom_call.1} parent=1 // pred_check_branch
      %340 = sbr.rel (0) target = $region53
    $region52: #{tpu_custom_call.1} parent=1 // pred_region
      %341 = dma.done [#allocation4], 16
    $region53: #{tpu_custom_call.1} parent=1 // pred_fallthru
      _
    %342 = vsyncpa [#allocation4], 1

// kernel: tpu_custom_call.1
$region0: #{tpu_custom_call.1}
  #allocation0 [shape = 'u32[]', space=smem, size = 0x4, offset = 0x4, fixed_abs, tag = 'smem constant byte address 0x4 - core index']
  #allocation1 [shape = 'u32[144,128]{1,0:T(1,128)}', space=vmem, size = 0x12000, scoped, tag = 'internal scratch']
  #allocation2 [shape = 'f32[1,1]{1,0:T(1,128)S(1)}', space=vmem, size = 0x200, scoped, tag = 'scoped memory for tpu_custom_call.1']
  %s0 = inlined_call_operand.vmem [shape: f32[8,32], index: 0, kind: input, shape index: {}]
  %s1 = inlined_call_operand.vmem [shape: f32[32,64], index: 1, kind: input, shape index: {}]
  %s2 = inlined_call_operand.vmem [shape: f32[1,64], index: 2, kind: input, shape index: {}]
  %s3 = inlined_call_operand.vmem [shape: f32[1,64], index: 3, kind: input, shape index: {}]
  %s4 = inlined_call_operand.vmem [shape: f32[1,64], index: 4, kind: input, shape index: {}]
  %s5 = inlined_call_operand.vmem [shape: f32[64,32], index: 5, kind: input, shape index: {}]
  %s6 = inlined_call_operand.vmem [shape: f32[1,32], index: 6, kind: input, shape index: {}]
  %s7 = inlined_call_operand.vmem [shape: f32[1,32], index: 7, kind: input, shape index: {}]
  %s8 = inlined_call_operand.vmem [shape: f32[1,32], index: 8, kind: input, shape index: {}]
  %s9 = inlined_call_operand.vmem [shape: f32[1,32], index: 9, kind: input, shape index: {}]
  %s10 = inlined_call_operand.<no memory space> [shape: f32[1,1], index: 10, kind: input, shape index: {}]
  %s11 = inlined_call_operand.hbm [shape: f32[1,8], index: 11, kind: output, shape index: {}]
  %s12 = sld [smem:[#allocation0]]
  $region54: #{tpu_custom_call.1} parent=0
    _
  %s14 = ssub.s32 1, %s12
  %s15 = scalar_select 0, %s14, %s12
  %v16 = vstv %s10
  %17 = vst [vmem:[#allocation2] sm:$0x1] %v16
  $region1: #{tpu_custom_call.1} parent=0
    #allocation3 [shape = 'u8[512]{0}', space=vmem, size = 0x400, scoped, tag = 'output window, operand 0, single buffered']
    #allocation4 [shape = 's32[1]{0}', space=sflag, size = 0x4, scoped, tag = 'scoped memory for tpu_custom_call.1']
    %18 = vsyncpa [#allocation4], 0
    // Predicated region
    $region2: #{tpu_custom_call.1} parent=1 // pred_check
      _
    $region3: #{tpu_custom_call.1} parent=1 // pred_check_branch
      %20 = sbr.rel (0) target = $region5
    $region4: #{tpu_custom_call.1} parent=1 // pred_region
      _
    $region5: #{tpu_custom_call.1} parent=1 // pred_fallthru
      _
    // Predicated region
    $region6: #{tpu_custom_call.1} parent=1 // pred_check
      _
    $region7: #{tpu_custom_call.1} parent=1 // pred_check_branch
      %22 = sbr.rel (0) target = $region9
    $region8: #{tpu_custom_call.1} parent=1 // pred_region
      _
    $region9: #{tpu_custom_call.1} parent=1 // pred_fallthru
      _
    // Predicated region
    $region10: #{tpu_custom_call.1} parent=1 // pred_check
      _
    $region11: #{tpu_custom_call.1} parent=1 // pred_check_branch
      %24 = sbr.rel (0) target = $region13
    $region12: #{tpu_custom_call.1} parent=1 // pred_region
      _
    $region13: #{tpu_custom_call.1} parent=1 // pred_fallthru
      _
    // Predicated region
    $region14: #{tpu_custom_call.1} parent=1 // pred_check
      _
    $region15: #{tpu_custom_call.1} parent=1 // pred_check_branch
      %26 = sbr.rel (0) target = $region17
    $region16: #{tpu_custom_call.1} parent=1 // pred_region
      _
    $region17: #{tpu_custom_call.1} parent=1 // pred_fallthru
      _
    // Predicated region
    $region18: #{tpu_custom_call.1} parent=1 // pred_check
      _
    $region19: #{tpu_custom_call.1} parent=1 // pred_check_branch
      %28 = sbr.rel (0) target = $region21
    $region20: #{tpu_custom_call.1} parent=1 // pred_region
      _
    $region21: #{tpu_custom_call.1} parent=1 // pred_fallthru
      _
    // Predicated region
    $region22: #{tpu_custom_call.1} parent=1 // pred_check
      _
    $region23: #{tpu_custom_call.1} parent=1 // pred_check_branch
      %30 = sbr.rel (0) target = $region25
    $region24: #{tpu_custom_call.1} parent=1 // pred_region
      _
    $region25: #{tpu_custom_call.1} parent=1 // pred_fallthru
      _
    // Predicated region
    $region26: #{tpu_custom_call.1} parent=1 // pred_check
      _
    $region27: #{tpu_custom_call.1} parent=1 // pred_check_branch
      %32 = sbr.rel (0) target = $region29
    $region28: #{tpu_custom_call.1} parent=1 // pred_region
      _
    $region29: #{tpu_custom_call.1} parent=1 // pred_fallthru
      _
    // Predicated region
    $region30: #{tpu_custom_call.1} parent=1 // pred_check
      _
    $region31: #{tpu_custom_call.1} parent=1 // pred_check_branch
      %34 = sbr.rel (0) target = $region33
    $region32: #{tpu_custom_call.1} parent=1 // pred_region
      _
    $region33: #{tpu_custom_call.1} parent=1 // pred_fallthru
      _
    // Predicated region
    $region34: #{tpu_custom_call.1} parent=1 // pred_check
      _
    $region35: #{tpu_custom_call.1} parent=1 // pred_check_branch
      %36 = sbr.rel (0) target = $region37
    $region36: #{tpu_custom_call.1} parent=1 // pred_region
      _
    $region37: #{tpu_custom_call.1} parent=1 // pred_fallthru
      _
    // Predicated region
    $region38: #{tpu_custom_call.1} parent=1 // pred_check
      _
    $region39: #{tpu_custom_call.1} parent=1 // pred_check_branch
      %38 = sbr.rel (0) target = $region41
    $region40: #{tpu_custom_call.1} parent=1 // pred_region
      _
    $region41: #{tpu_custom_call.1} parent=1 // pred_fallthru
      _
    // Predicated region
    $region42: #{tpu_custom_call.1} parent=1 // pred_check
      _
    $region43: #{tpu_custom_call.1} parent=1 // pred_check_branch
      %40 = sbr.rel (0) target = $region45
    $region44: #{tpu_custom_call.1} parent=1 // pred_region
      _
    $region45: #{tpu_custom_call.1} parent=1 // pred_fallthru
      _
    %v41 = vld [vmem:[%s0] sm:$0xff]
    %v42 = vld [vmem:[%s1] sm:$0xff]
    %v43 = vld [vmem:[%s1 + $0x8] sm:$0xff]
    %v44 = vld [vmem:[%s1 + $0x10] sm:$0xff]
    %v45 = vld [vmem:[%s1 + $0x18] sm:$0xff]
    %v46 = vld [vmem:[%s2] sm:$0x1]
    %v48 = vlaneseq
    %v49 = vshrl.u32 %v48, 7
    %v50 = vsub.s32 0, %v49
    %v51 = vrot.slane %v46, %v50
    %vm53 = vcmask 261120
    %v55 = vsel %vm53, %v41, 0
    %57 = vmatprep.subr.mxu0 0.0
    %58 = vmatpush1.msra.mxu0 %v42
    %59 = vmatprep.subr.mxu0 0.0
    %60 = vmatpush1.msra.mxu0 %v43
    %61 = vmatprep.subr.mxu0 0.0
    %62 = vmatpush1.msra.mxu0 %v44
    %63 = vmatprep.subr.mxu0 0.0
    %64 = vmatpush1.msra.mxu0 %v45
    %65 = vmatprep.subr.mxu0 0.0
    %66 = vmatpush1.msra.mxu0 0.0
    %67 = vmatprep.subr.mxu0 0.0
    %68 = vmatpush1.msra.mxu0 0.0
    %69 = vmatprep.subr.mxu0 0.0
    %70 = vmatpush1.msra.mxu0 0.0
    %71 = vmatprep.subr.mxu0 0.0
    %72 = vmatpush1.msra.mxu0 0.0
    %73 = vmatprep.subr.mxu0 0.0
    %74 = vmatpush1.msra.mxu0 0.0
    %75 = vmatprep.subr.mxu0 0.0
    %76 = vmatpush1.msra.mxu0 0.0
    %77 = vmatprep.subr.mxu0 0.0
    %78 = vmatpush1.msra.mxu0 0.0
    %79 = vmatprep.subr.mxu0 0.0
    %80 = vmatpush1.msra.mxu0 0.0
    %81 = vmatprep.subr.mxu0 0.0
    %82 = vmatpush1.msra.mxu0 0.0
    %83 = vmatprep.subr.mxu0 0.0
    %84 = vmatpush1.msra.mxu0 0.0
    %85 = vmatprep.subr.mxu0 0.0
    %86 = vmatpush1.msra.mxu0 0.0
    %87 = vmatprep.subr.mxu0 0.0
    %88 = vmatpush1.msra.mxu0 0.0
    %89 = vmatprep.subr.mxu0 0.0
    %90 = vmatpush1.msra.mxu0 0.0
    %91 = vmatprep.subr.mxu0 0.0
    %92 = vmatpush1.msra.mxu0 0.0
    %93 = vmatprep.subr.mxu0 0.0
    %94 = vmatpush1.msra.mxu0 0.0
    %95 = vmatprep.subr.mxu0 0.0
    %96 = vmatpush1.msra.mxu0 0.0
    %97 = vmatprep.subr.mxu0 0.0
    %98 = vmatpush1.msra.mxu0 0.0
    %99 = vmatprep.subr.mxu0 0.0
    %100 = vmatpush1.msra.mxu0 0.0
    %101 = vmatprep.subr.mxu0 0.0
    %102 = vmatpush1.msra.mxu0 0.0
    %103 = vmatprep.subr.mxu0 0.0
    %104 = vmatpush1.msra.mxu0 0.0
    %105 = vmatprep.subr.mxu0 0.0
    %106 = vmatpush1.msra.mxu0 0.0
    %107 = vmatprep.subr.mxu0 0.0
    %108 = vmatpush1.msra.mxu0 0.0
    %109 = vmatprep.subr.mxu0 0.0
    %110 = vmatpush1.msra.mxu0 0.0
    %111 = vmatprep.subr.mxu0 0.0
    %112 = vmatpush1.msra.mxu0 0.0
    %113 = vmatprep.subr.mxu0 0.0
    %114 = vmatpush1.msra.mxu0 0.0
    %115 = vmatprep.subr.mxu0 0.0
    %116 = vmatpush1.msra.mxu0 0.0
    %117 = vmatprep.subr.mxu0 0.0
    %118 = vmatpush1.msra.mxu0 0.0
    %119 = vmatprep.subr.mxu0 0.0
    %120 = vmatpush1.msra.mxu0 0.0
    %121 = vmatprep.mubr.f32.mxu0 0.0
    %122 = vmatmul.mubr.f32.gmra.mrb[0].mxu0 %v55
    %v123 = vpop.f32.mrb[0].mxu0
    %v124 = vadd.f32 %v51, %v123
    %v125 = vpop.f32.mrb[0].mxu0
    %126 = vdwg.mxu0
    %v127 = vld [vmem:[%s3] sm:$0x1]
    %v128 = vld [vmem:[%s4] sm:$0x1]
    %vm129 = vcmask 523264
    %v130 = vsel %vm129, %v124, 0.0
    %131 = vadd.xlane.f32.xlu0 %v130
    %v132 = vpop.xlane.xlu0 %131
    %v133 = vmul.f32 %v132, 0.015625
    %v134 = vsub.f32 %v124, %v133
    %v135 = vmul.f32 %v134, %v134
    %v136 = vsel %vm129, %v135, 0.0
    %137 = vadd.xlane.f32.xlu0 %v136
    %v138 = vpop.xlane.xlu0 %137
    %v139 = vmul.f32 %v138, 0.015625
    %v140 = vadd.f32 %v139, 1e-05
    %v141 = vrsqrt.pop %v140
    %v142 = vmul.f32 %v134, %v141
    %v144 = vlaneseq
    %v145 = vshrl.u32 %v144, 7
    %v146 = vsub.s32 0, %v145
    %v147 = vrot.slane %v127, %v146
    %v149 = vmul.f32 %v142, %v147
    %v151 = vlaneseq
    %v152 = vshrl.u32 %v151, 7
    %v153 = vsub.s32 0, %v152
    %v154 = vrot.slane %v128, %v153
    %v156 = vadd.f32 %v149, %v154
    %v157 = vmax.f32 %v156, 0.0
    %v158 = vld [vmem:[%s5] sm:$0xff]
    %v159 = vld [vmem:[%s5 + $0x8] sm:$0xff]
    %v160 = vld [vmem:[%s5 + $0x10] sm:$0xff]
    %v161 = vld [vmem:[%s5 + $0x18] sm:$0xff]
    %v162 = vld [vmem:[%s5 + $0x20] sm:$0xff]
    %v163 = vld [vmem:[%s5 + $0x28] sm:$0xff]
    %v164 = vld [vmem:[%s5 + $0x30] sm:$0xff]
    %v165 = vld [vmem:[%s5 + $0x38] sm:$0xff]
    %v166 = vld [vmem:[%s6] sm:$0x1]
    %v168 = vlaneseq
    %v169 = vshrl.u32 %v168, 7
    %v170 = vsub.s32 0, %v169
    %v171 = vrot.slane %v166, %v170
    %v174 = vsel %vm129, %v157, 0
    %176 = vmatprep.subr.mxu0 0.0
    %177 = vmatpush1.msra.mxu0 %v158
    %178 = vmatprep.subr.mxu0 0.0
    %179 = vmatpush1.msra.mxu0 %v159
    %180 = vmatprep.subr.mxu0 0.0
    %181 = vmatpush1.msra.mxu0 %v160
    %182 = vmatprep.subr.mxu0 0.0
    %183 = vmatpush1.msra.mxu0 %v161
    %184 = vmatprep.subr.mxu0 0.0
    %185 = vmatpush1.msra.mxu0 %v162
    %186 = vmatprep.subr.mxu0 0.0
    %187 = vmatpush1.msra.mxu0 %v163
    %188 = vmatprep.subr.mxu0 0.0
    %189 = vmatpush1.msra.mxu0 %v164
    %190 = vmatprep.subr.mxu0 0.0
    %191 = vmatpush1.msra.mxu0 %v165
    %192 = vmatprep.subr.mxu0 0.0
    %193 = vmatpush1.msra.mxu0 0.0
    %194 = vmatprep.subr.mxu0 0.0
    %195 = vmatpush1.msra.mxu0 0.0
    %196 = vmatprep.subr.mxu0 0.0
    %197 = vmatpush1.msra.mxu0 0.0
    %198 = vmatprep.subr.mxu0 0.0
    %199 = vmatpush1.msra.mxu0 0.0
    %200 = vmatprep.subr.mxu0 0.0
    %201 = vmatpush1.msra.mxu0 0.0
    %202 = vmatprep.subr.mxu0 0.0
    %203 = vmatpush1.msra.mxu0 0.0
    %204 = vmatprep.subr.mxu0 0.0
    %205 = vmatpush1.msra.mxu0 0.0
    %206 = vmatprep.subr.mxu0 0.0
    %207 = vmatpush1.msra.mxu0 0.0
    %208 = vmatprep.subr.mxu0 0.0
    %209 = vmatpush1.msra.mxu0 0.0
    %210 = vmatprep.subr.mxu0 0.0
    %211 = vmatpush1.msra.mxu0 0.0
    %212 = vmatprep.subr.mxu0 0.0
    %213 = vmatpush1.msra.mxu0 0.0
    %214 = vmatprep.subr.mxu0 0.0
    %215 = vmatpush1.msra.mxu0 0.0
    %216 = vmatprep.subr.mxu0 0.0
    %217 = vmatpush1.msra.mxu0 0.0
    %218 = vmatprep.subr.mxu0 0.0
    %219 = vmatpush1.msra.mxu0 0.0
    %220 = vmatprep.subr.mxu0 0.0
    %221 = vmatpush1.msra.mxu0 0.0
    %222 = vmatprep.subr.mxu0 0.0
    %223 = vmatpush1.msra.mxu0 0.0
    %224 = vmatprep.subr.mxu0 0.0
    %225 = vmatpush1.msra.mxu0 0.0
    %226 = vmatprep.subr.mxu0 0.0
    %227 = vmatpush1.msra.mxu0 0.0
    %228 = vmatprep.subr.mxu0 0.0
    %229 = vmatpush1.msra.mxu0 0.0
    %230 = vmatprep.subr.mxu0 0.0
    %231 = vmatpush1.msra.mxu0 0.0
    %232 = vmatprep.subr.mxu0 0.0
    %233 = vmatpush1.msra.mxu0 0.0
    %234 = vmatprep.subr.mxu0 0.0
    %235 = vmatpush1.msra.mxu0 0.0
    %236 = vmatprep.subr.mxu0 0.0
    %237 = vmatpush1.msra.mxu0 0.0
    %238 = vmatprep.subr.mxu0 0.0
    %239 = vmatpush1.msra.mxu0 0.0
    %240 = vmatprep.mubr.f32.mxu0 0.0
    %241 = vmatmul.mubr.f32.gmra.mrb[0].mxu0 %v174
    %v242 = vpop.f32.mrb[0].mxu0
    %v243 = vadd.f32 %v171, %v242
    %v244 = vpop.f32.mrb[0].mxu0
    %245 = vdwg.mxu0
    %v246 = vld [vmem:[%s7] sm:$0x1]
    %v247 = vld [vmem:[%s8] sm:$0x1]
    %v248 = vsel %vm53, %v243, 0.0
    %249 = vadd.xlane.f32.xlu0 %v248
    %v250 = vpop.xlane.xlu0 %249
    %v251 = vmul.f32 %v250, 0.03125
    %v252 = vsub.f32 %v243, %v251
    %v253 = vmul.f32 %v252, %v252
    %v254 = vsel %vm53, %v253, 0.0
    %255 = vadd.xlane.f32.xlu0 %v254
    %v256 = vpop.xlane.xlu0 %255
    %v257 = vmul.f32 %v256, 0.03125
    %v258 = vadd.f32 %v257, 1e-05
    %v259 = vrsqrt.pop %v258
    %v260 = vmul.f32 %v252, %v259
    %v262 = vlaneseq
    %v263 = vshrl.u32 %v262, 7
    %v264 = vsub.s32 0, %v263
    %v265 = vrot.slane %v246, %v264
    %v267 = vmul.f32 %v260, %v265
    %v269 = vlaneseq
    %v270 = vshrl.u32 %v269, 7
    %v271 = vsub.s32 0, %v270
    %v272 = vrot.slane %v247, %v271
    %v274 = vadd.f32 %v267, %v272
    %v275 = vmax.f32 %v274, 0.0
    %v276 = vld [vmem:[%s9] sm:$0x1]
    %v278 = vlaneseq
    %v279 = vshrl.u32 %v278, 7
    %v280 = vsub.s32 0, %v279
    %v281 = vrot.slane %v276, %v280
    %v283 = vmul.f32 %v275, %v281
    %v284 = vsel %vm53, %v283, 0.0
    %285 = vadd.xlane.f32.xlu0 %v284
    %v286 = vpop.xlane.xlu0 %285
    %v287 = vld [vmem:[#allocation2] sm:$0x1]
    %v289 = vlaneseq
    %v290 = vshrl.u32 %v289, 7
    %v291 = vsub.s32 0, %v290
    %v292 = vrot.slane %v287, %v291
    %v294 = vadd.f32 %v286, %v292
    %295 = vxpose.xlu0.b32.start [1/16] %v294, 128
    %296 = vxpose.xlu0.b32.cont [2/16] 0.0, 128
    %297 = vxpose.xlu0.b32.cont [3/16] 0.0, 128
    %298 = vxpose.xlu0.b32.cont [4/16] 0.0, 128
    %299 = vxpose.xlu0.b32.cont [5/16] 0.0, 128
    %300 = vxpose.xlu0.b32.cont [6/16] 0.0, 128
    %301 = vxpose.xlu0.b32.cont [7/16] 0.0, 128
    %302 = vxpose.xlu0.b32.cont [8/16] 0.0, 128
    %303 = vxpose.xlu0.b32.cont [9/16] 0.0, 128
    %304 = vxpose.xlu0.b32.cont [10/16] 0.0, 128
    %305 = vxpose.xlu0.b32.cont [11/16] 0.0, 128
    %306 = vxpose.xlu0.b32.cont [12/16] 0.0, 128
    %307 = vxpose.xlu0.b32.cont [13/16] 0.0, 128
    %308 = vxpose.xlu0.b32.cont [14/16] 0.0, 128
    %309 = vxpose.xlu0.b32.cont [15/16] 0.0, 128
    %310 = vxpose.xlu0.b32.end [16/16] 0.0, 128
    %v311 = vpop.trf.xlu0
    %v312 = vpop.trf.xlu0
    %v313 = vpop.trf.xlu0
    %v314 = vpop.trf.xlu0
    %v315 = vpop.trf.xlu0
    %v316 = vpop.trf.xlu0
    %v317 = vpop.trf.xlu0
    %v318 = vpop.trf.xlu0
    %v319 = vpop.trf.xlu0
    %v320 = vpop.trf.xlu0
    %v321 = vpop.trf.xlu0
    %v322 = vpop.trf.xlu0
    %v323 = vpop.trf.xlu0
    %v324 = vpop.trf.xlu0
    %v325 = vpop.trf.xlu0
    %v326 = vpop.trf.xlu0
    %vm327 = vcmask 57344
    %328 = vst.msk [vmem:[#allocation3] sm:$0x1] %vm327, %v311
    // Predicated region
    $region46: #{tpu_custom_call.1} parent=1 // pred_check
      _
    $region47: #{tpu_custom_call.1} parent=1 // pred_check_branch
      %330 = sbr.rel (0) target = $region49
    $region48: #{tpu_custom_call.1} parent=1 // pred_region
      %s332 = ssub.s32 16, 16
      %333 = vsyncadd [#allocation4], %s332
      %s335 = sshll.u32 [#allocation3], 4
      %s336 = int_to_ptr.vmem [resolvable:$true] %s335
      %338 = dma.vmem_to_hbm [thread:$0]  %s336, 16, %s11, [#allocation4]
    $region49: #{tpu_custom_call.1} parent=1 // pred_fallthru
      _
    // Predicated region
    $region50: #{tpu_custom_call.1} parent=1 // pred_check
      _
    $region51: #{tpu_custom_call.1} parent=1 // pred_check_branch
      %340 = sbr.rel (0) target = $region53
    $region52: #{tpu_custom_call.1} parent=1 // pred_region
      %341 = dma.done [#allocation4], 16
    $region53: #{tpu_custom_call.1} parent=1 // pred_fallthru
      _
    %342 = vsyncpa [#allocation4], 1

</llo_original>
